<compile_context>
chip_gen: v6e
topology: v6e:2x2x1
jax: 0.10.0
libtpu: 0.0.40
codegen_flags: <defaults>
</compile_context>

<pallas_src>
import functools

import jax
import jax.numpy as jnp
from jax import lax
from jax.experimental import pallas as pl
from jax.experimental.pallas import tpu as pltpu


def _odefunc_kernel(n_linear, sign, input_is_row_major, y_ref, *refs):
    """One batch tile of the ODEFunc MLP; batch is carried on the 128-lane axis.

    y_ref: [batch_tile, n_inputs] when input_is_row_major else
           [n_inputs, batch_tile].
    refs : interleaved (W, b) per Linear layer (W: PyTorch [out, in] in compute
           dtype, b: [out, 1] float32), then the output ref
           [n_inputs, batch_tile] (lane-dense store).
    """
    w_refs = [refs[2 * i] for i in range(n_linear)]
    b_refs = [refs[2 * i + 1] for i in range(n_linear)]
    o_ref = refs[2 * n_linear]

    # bf16 (compute-dtype) cast fused into the kernel — no wrapper XLA cast op.
    y = y_ref[...].astype(w_refs[0].dtype)

    if input_is_row_major:
        # W0[out, in] contracted with y[batch, in] over `in` -> [out, batch].
        # Transposed-RHS contraction (einsum-style) folds into the MXU op, so
        # no separate wrapper transpose / extra HBM round trip for y.
        x = lax.dot_general(w_refs[0][...], y,
                            dimension_numbers=(((1,), (1,)), ((), ())),
                            preferred_element_type=jnp.float32)
    else:
        # y already [n_inputs, batch_tile] (feature-major solver-state layout).
        x = jnp.dot(w_refs[0][...], y, preferred_element_type=jnp.float32)
    x = x + b_refs[0][...]

    # Hidden [Tanh; Linear] blocks and the final Tanh; Linear, uniformly:
    for i in range(1, n_linear):
        h = jnp.tanh(x).astype(w_refs[i].dtype)
        x = jnp.dot(w_refs[i][...], h,
                    preferred_element_type=jnp.float32) + b_refs[i][...]

    if sign < 0:                      # backwards=True: negate in the epilogue (free)
        x = -x
    o_ref[...] = x.astype(o_ref.dtype)


def _choose_batch_tile(batch, n_units):
    """Lane-aligned batch tile: fewest grid steps, bounded by vreg pressure.

    Live activations across the layer chain are x (f32, 4 B) and h (bf16, 2 B),
    each [n_units, tile]; keeping 6*n_units*tile under ~192 KiB of the 256 KiB
    vreg file avoids spills (v5e has a single vst slot, so spill stores would
    become the binding VLIW slot).  Within that cap, use the fewest lane-dense
    (multiple-of-128) tiles: each grid step costs ~600 cycles of overhead and
    bigger tiles also improve the y/out DMA efficiency and v5e MXU feed.
    """
    cap = (192 * 1024 // max(6 * n_units, 1)) // 128 * 128
    cap = max(128, min(1024, cap))
    num_steps = max(1, -(-batch // cap))        # fewest steps under the cap
    per_step = -(-batch // num_steps)
    tile = -(-per_step // 128) * 128            # lane-dense tile (unmasked stores)
    return tile, num_steps


def _build_pallas_call(n_linear, sign, input_is_row_major, n_inputs, batch_tile,
                       num_tiles, param_shapes, out_dtype, single_buffer_weights,
                       vmem_limit_bytes, cost_estimate):
    if input_is_row_major:
        y_spec = pl.BlockSpec((batch_tile, n_inputs), lambda i: (i, 0))
    else:
        y_spec = pl.BlockSpec((n_inputs, batch_tile), lambda i: (0, i))
    in_specs = [y_spec]

    # Grid-invariant weights/biases: constant index_map => DMA'd once regardless
    # of buffering mode.  Optional pl.Buffered(1) halves their VMEM residency
    # (matters for large n_units on v7x's 64 MiB VMEM).
    w_kwargs = dict(pipeline_mode=pl.Buffered(1)) if single_buffer_weights else {}
    for (w_shape, b_shape) in param_shapes:
        in_specs.append(pl.BlockSpec(w_shape, lambda i: (0, 0), **w_kwargs))
        in_specs.append(pl.BlockSpec(b_shape, lambda i: (0, 0)))

    out_spec = pl.BlockSpec((n_inputs, batch_tile), lambda i: (0, i))

    kernel = functools.partial(_odefunc_kernel, n_linear, sign, input_is_row_major)
    return pl.pallas_call(
        kernel,
        out_shape=jax.ShapeDtypeStruct((n_inputs, num_tiles * batch_tile), out_dtype),
        grid_spec=pltpu.PrefetchScalarGridSpec(
            num_scalar_prefetch=0,
            grid=(num_tiles,),
            in_specs=in_specs,
            out_specs=out_spec,
        ),
        compiler_params=pltpu.CompilerParams(
            # Megacore sharding only pays off with >=2 substantial tiles (v7x);
            # on single-TC v5e/v6e the grid is a serial loop either way.
            dimension_semantics=(("parallel",) if num_tiles > 1 else ("arbitrary",)),
            vmem_limit_bytes=vmem_limit_bytes,
        ),
        cost_estimate=cost_estimate,
    )


def ode_func_forward(t_local, y, params, *, backwards=False, batch_tile=None,
                     compute_dtype=jnp.bfloat16, feature_major_io=False,
                     single_buffer_weights=False):
    """Pallas-backed forward of ODEFunc.

    Args:
      t_local: ignored (matches the PyTorch module).
      y: [batch, n_inputs] (default) or [n_inputs, batch] if feature_major_io.
      params: list of (W, b) in native PyTorch layout: W [out, in], b [out].
      backwards: negate the gradient (fused into the kernel epilogue).
      batch_tile: lanes per grid step (multiple of 128); auto-chosen from the
        batch size and n_units (vreg-pressure bound) when None.
      compute_dtype: MXU operand dtype (bf16 default, f32 accumulation).  Pass
        jnp.float32 as an escape hatch if an adaptive solver's step-size control
        is sensitive to ~1e-2-level relative error.
      feature_major_io: take y and return grad in [n_inputs, batch] layout so a
        solver loop can keep its state feature-major and skip per-RHS-eval
        transposes entirely.
      single_buffer_weights: request pl.Buffered(1) on the grid-invariant weight
        blocks (halves weight VMEM; useful for large n_units on v7x).
    """
    del t_local
    if feature_major_io:
        n_inputs, B = y.shape
    else:
        B, n_inputs = y.shape
    n_linear = len(params)
    n_layers = n_linear - 2
    assert n_layers >= 0
    n_units = params[0][0].shape[0]

    if batch_tile is None:
        batch_tile, num_tiles = _choose_batch_tile(B, n_units)
    else:
        num_tiles = -(-B // batch_tile)
    B_pad = num_tiles * batch_tile

    # No wrapper transpose/cast of y; only a zero-pad for ragged batches.
    if B_pad != B:
        pad = B_pad - B
        y = jnp.pad(y, ((0, 0), (0, pad)) if feature_major_io else ((0, pad), (0, 0)))

    flat_params, param_shapes = [], []
    w_bytes = b_bytes = 0
    for W, b in params:
        Wc = jnp.asarray(W, compute_dtype)                 # PyTorch [out, in]
        bc = jnp.asarray(b, jnp.float32).reshape(-1, 1)    # [out, 1], added in f32
        flat_params += [Wc, bc]
        param_shapes.append((Wc.shape, bc.shape))
        w_bytes += Wc.shape[0] * Wc.shape[1] * Wc.dtype.itemsize
        b_bytes += bc.shape[0] * 4

    out_dtype = y.dtype
    in_itemsize = jnp.dtype(y.dtype).itemsize
    out_itemsize = jnp.dtype(out_dtype).itemsize
    compute_itemsize = jnp.dtype(compute_dtype).itemsize

    # Explicit VMEM budget (portable to v7x's 64 MiB VMEM): weight/bias residency
    # (x2 unless single-buffered), double-buffered I/O blocks, activation slack.
    wb_factor = 1 if single_buffer_weights else 2
    need = (wb_factor * w_bytes + 2 * b_bytes
            + 2 * batch_tile * n_inputs * (in_itemsize + out_itemsize)
            + 2 * batch_tile * n_units * (4 + compute_itemsize))
    vmem_limit = int(min(max(4 * need, 16 << 20), 64 << 20))

    # Advisory cost hint so XLA schedules the surrounding ops sensibly.
    flops = 2 * B_pad * sum(ws[0] * ws[1] for ws, _ in param_shapes)
    transcendentals = B_pad * n_units * (n_linear - 1)
    bytes_accessed = (B_pad * n_inputs * (in_itemsize + out_itemsize)
                      + w_bytes + b_bytes)
    cost = pl.CostEstimate(flops=int(flops), transcendentals=int(transcendentals),
                           bytes_accessed=int(bytes_accessed))

    sign = -1 if backwards else 1
    call = _build_pallas_call(n_linear, sign, not feature_major_io, n_inputs,
                              batch_tile, num_tiles, param_shapes, out_dtype,
                              single_buffer_weights, vmem_limit, cost)
    grad_fm = call(y, *flat_params)                 # [n_inputs, B_pad], lane-dense

    if feature_major_io:
        return grad_fm[:, :B]
    # Single wrapper op back to the user-facing [batch, n_inputs] layout.
    return jnp.transpose(grad_fm[:, :B])


def init_params(key, n_inputs, n_layers, n_units, dtype=jnp.float32):
    """Deterministic synthetic parameters (PyTorch-Linear-like uniform init).

    Returns list of (W, b) in native PyTorch layout: W [out, in], b [out].
    """
    dims = [(n_inputs, n_units)]
    for _ in range(n_layers):
        dims.append((n_units, n_units))
    dims.append((n_units, n_inputs))

    params = []
    for (fan_in, fan_out) in dims:
        key, kw, kb = jax.random.split(key, 3)
        bound = 1.0 / (fan_in ** 0.5)
        W = jax.random.uniform(kw, (fan_out, fan_in), dtype, -bound, bound)
        b = jax.random.uniform(kb, (fan_out,), dtype, -bound, bound)
        params.append((W, b))
    return params


def ode_func_reference(y, params, compute_dtype=None):
    """Plain-JAX reference (row-major [batch, features]).

    compute_dtype=None -> full f32; compute_dtype=bf16 mirrors the kernel's
    bf16-MXU / f32-accumulate numerics.
    """
    def lin(x, W, b):
        if compute_dtype is not None:
            xd, Wd = x.astype(compute_dtype), W.astype(compute_dtype)
        else:
            xd, Wd = x, W
        return (jnp.dot(xd, Wd.T, preferred_element_type=jnp.float32)
                + b.reshape(1, -1).astype(jnp.float32))

    x = y.astype(jnp.float32)
    x = lin(x, *params[0])                 # first Linear
    for W, b in params[1:-1]:              # hidden Tanh+Linear blocks
        x = lin(jnp.tanh(x), W, b)
    x = lin(jnp.tanh(x), *params[-1])      # final Tanh + Linear
    return x


if __name__ == "__main__":
    # Shapes consistent with ODEFunc(n_inputs, n_layers, n_units); ragged batch
    # exercises padding up to one lane-dense tile (200 -> single 256-lane step).
    n_inputs, n_layers, n_units = 16, 2, 32
    batch = 200

    key = jax.random.PRNGKey(0)
    key, ky = jax.random.split(key)
    y = jax.random.normal(ky, (batch, n_inputs), jnp.float32)
    t_local = jnp.float32(0.0)  # ignored, as in the PyTorch module

    params = init_params(key, n_inputs, n_layers, n_units)

    grad = jax.block_until_ready(ode_func_forward(t_local, y, params, backwards=False))
    assert grad.shape == (batch, n_inputs)

    ref_bf16 = ode_func_reference(y, params, compute_dtype=jnp.bfloat16)
    ref_f32 = ode_func_reference(y, params)
    assert jnp.allclose(grad, ref_bf16, atol=2e-3, rtol=2e-3), "mismatch vs bf16 reference"
    assert jnp.allclose(grad, ref_f32, atol=5e-2, rtol=5e-2), "mismatch vs f32 reference"

    # backwards negation path (fused in-kernel epilogue)
    grad_b = jax.block_until_ready(ode_func_forward(t_local, y, params, backwards=True))
    assert jnp.allclose(grad_b, -grad, atol=1e-6, rtol=1e-6)

    # feature-major IO path (solver-loop layout: no per-eval transposes at all)
    grad_fm = jax.block_until_ready(
        ode_func_forward(t_local, jnp.transpose(y), params, feature_major_io=True))
    assert grad_fm.shape == (n_inputs, batch)
    assert jnp.allclose(jnp.transpose(grad_fm), ref_bf16, atol=2e-3, rtol=2e-3)

    # multi-tile grid path (explicit 128-lane tiles -> 2 steps, "parallel" axis)
    grad_mt = jax.block_until_ready(ode_func_forward(t_local, y, params, batch_tile=128))
    assert jnp.allclose(grad_mt, ref_bf16, atol=2e-3, rtol=2e-3)

    print("KERNEL_OK")
</pallas_src>

<mosaic_0001>
module attributes {stable_mosaic.version = 11 : i64} {
  func.func @_odefunc_kernel(%arg0: i32, %arg1: memref<256x16xf32, #tpu.memory_space<vmem>>, %arg2: memref<32x16xbf16, #tpu.memory_space<vmem>>, %arg3: memref<32x1xf32, #tpu.memory_space<vmem>>, %arg4: memref<32x32xbf16, #tpu.memory_space<vmem>>, %arg5: memref<32x1xf32, #tpu.memory_space<vmem>>, %arg6: memref<32x32xbf16, #tpu.memory_space<vmem>>, %arg7: memref<32x1xf32, #tpu.memory_space<vmem>>, %arg8: memref<16x32xbf16, #tpu.memory_space<vmem>>, %arg9: memref<16x1xf32, #tpu.memory_space<vmem>>, %arg10: memref<16x256xf32, #tpu.memory_space<vmem>>) attributes {dimension_semantics = [#tpu.dimension_semantics<arbitrary>], iteration_bounds = array<i64: 1>, scalar_prefetch = 0 : i64, scratch_operands = 0 : i64, tpu.core_type = #tpu.core_type<tc>, window_params = [{transform_indices = @transform_0, window_bounds = array<i64: 256, 16>}, {pipeline_mode = #tpu.pipeline_mode<synchronous>, transform_indices = @transform_1, window_bounds = array<i64: 32, 16>}, {pipeline_mode = #tpu.pipeline_mode<synchronous>, transform_indices = @transform_2, window_bounds = array<i64: 32, 1>}, {pipeline_mode = #tpu.pipeline_mode<synchronous>, transform_indices = @transform_3, window_bounds = array<i64: 32, 32>}, {pipeline_mode = #tpu.pipeline_mode<synchronous>, transform_indices = @transform_4, window_bounds = array<i64: 32, 1>}, {pipeline_mode = #tpu.pipeline_mode<synchronous>, transform_indices = @transform_5, window_bounds = array<i64: 32, 32>}, {pipeline_mode = #tpu.pipeline_mode<synchronous>, transform_indices = @transform_6, window_bounds = array<i64: 32, 1>}, {pipeline_mode = #tpu.pipeline_mode<synchronous>, transform_indices = @transform_7, window_bounds = array<i64: 16, 32>}, {pipeline_mode = #tpu.pipeline_mode<synchronous>, transform_indices = @transform_8, window_bounds = array<i64: 16, 1>}, {transform_indices = @transform_9, window_bounds = array<i64: 16, 256>}]} {
    %c0 = arith.constant 0 : index
    %c0_0 = arith.constant 0 : index
    %0 = vector.load %arg1[%c0, %c0_0] : memref<256x16xf32, #tpu.memory_space<vmem>>, vector<256x16xf32>
    %1 = arith.truncf %0 : vector<256x16xf32> to vector<256x16xbf16>
    %c0_1 = arith.constant 0 : index
    %c0_2 = arith.constant 0 : index
    %2 = vector.load %arg2[%c0_1, %c0_2] : memref<32x16xbf16, #tpu.memory_space<vmem>>, vector<32x16xbf16>
    %cst = arith.constant dense<0.000000e+00> : vector<32x256xf32>
    %3 = tpu.matmul %2, %1, %cst {dimension_numbers = #tpu.dot_dimension_numbers<[1], [1], [0], [0], [0, 0, 1, 0], [], []>} : vector<32x16xbf16>, vector<256x16xbf16>, vector<32x256xf32> -> vector<32x256xf32>
    %c0_3 = arith.constant 0 : index
    %c0_4 = arith.constant 0 : index
    %4 = vector.load %arg3[%c0_3, %c0_4] : memref<32x1xf32, #tpu.memory_space<vmem>>, vector<32x1xf32>
    %5 = vector.broadcast %4 : vector<32x1xf32> to vector<32x256xf32>
    %6 = arith.addf %3, %5 : vector<32x256xf32>
    %7 = math.tanh %6 : vector<32x256xf32>
    %8 = arith.truncf %7 : vector<32x256xf32> to vector<32x256xbf16>
    %c0_5 = arith.constant 0 : index
    %c0_6 = arith.constant 0 : index
    %9 = vector.load %arg4[%c0_5, %c0_6] : memref<32x32xbf16, #tpu.memory_space<vmem>>, vector<32x32xbf16>
    %cst_7 = arith.constant dense<0.000000e+00> : vector<32x256xf32>
    %10 = tpu.matmul %9, %8, %cst_7 {dimension_numbers = #tpu.dot_dimension_numbers<[1], [0], [0], [1], [0, 0, 1, 1], [], []>} : vector<32x32xbf16>, vector<32x256xbf16>, vector<32x256xf32> -> vector<32x256xf32>
    %c0_8 = arith.constant 0 : index
    %c0_9 = arith.constant 0 : index
    %11 = vector.load %arg5[%c0_8, %c0_9] : memref<32x1xf32, #tpu.memory_space<vmem>>, vector<32x1xf32>
    %12 = vector.broadcast %11 : vector<32x1xf32> to vector<32x256xf32>
    %13 = arith.addf %10, %12 : vector<32x256xf32>
    %14 = math.tanh %13 : vector<32x256xf32>
    %15 = arith.truncf %14 : vector<32x256xf32> to vector<32x256xbf16>
    %c0_10 = arith.constant 0 : index
    %c0_11 = arith.constant 0 : index
    %16 = vector.load %arg6[%c0_10, %c0_11] : memref<32x32xbf16, #tpu.memory_space<vmem>>, vector<32x32xbf16>
    %cst_12 = arith.constant dense<0.000000e+00> : vector<32x256xf32>
    %17 = tpu.matmul %16, %15, %cst_12 {dimension_numbers = #tpu.dot_dimension_numbers<[1], [0], [0], [1], [0, 0, 1, 1], [], []>} : vector<32x32xbf16>, vector<32x256xbf16>, vector<32x256xf32> -> vector<32x256xf32>
    %c0_13 = arith.constant 0 : index
    %c0_14 = arith.constant 0 : index
    %18 = vector.load %arg7[%c0_13, %c0_14] : memref<32x1xf32, #tpu.memory_space<vmem>>, vector<32x1xf32>
    %19 = vector.broadcast %18 : vector<32x1xf32> to vector<32x256xf32>
    %20 = arith.addf %17, %19 : vector<32x256xf32>
    %21 = math.tanh %20 : vector<32x256xf32>
    %22 = arith.truncf %21 : vector<32x256xf32> to vector<32x256xbf16>
    %c0_15 = arith.constant 0 : index
    %c0_16 = arith.constant 0 : index
    %23 = vector.load %arg8[%c0_15, %c0_16] : memref<16x32xbf16, #tpu.memory_space<vmem>>, vector<16x32xbf16>
    %cst_17 = arith.constant dense<0.000000e+00> : vector<16x256xf32>
    %24 = tpu.matmul %23, %22, %cst_17 {dimension_numbers = #tpu.dot_dimension_numbers<[1], [0], [0], [1], [0, 0, 1, 1], [], []>} : vector<16x32xbf16>, vector<32x256xbf16>, vector<16x256xf32> -> vector<16x256xf32>
    %c0_18 = arith.constant 0 : index
    %c0_19 = arith.constant 0 : index
    %25 = vector.load %arg9[%c0_18, %c0_19] : memref<16x1xf32, #tpu.memory_space<vmem>>, vector<16x1xf32>
    %26 = vector.broadcast %25 : vector<16x1xf32> to vector<16x256xf32>
    %27 = arith.addf %24, %26 : vector<16x256xf32>
    %c0_20 = arith.constant 0 : index
    %c0_21 = arith.constant 0 : index
    %28 = vector.load %arg10[%c0_20, %c0_21] : memref<16x256xf32, #tpu.memory_space<vmem>>, vector<16x256xf32>
    tpu.vector_store %arg10[%c0_20, %c0_21], %27 {strides = array<i32>} : memref<16x256xf32, #tpu.memory_space<vmem>>, vector<16x256xf32>,
    return
  }
  func.func @transform_0(%arg0: i32) -> (i32, i32) {
    %c0_i32 = arith.constant 0 : i32
    %c0_i32_0 = arith.constant 0 : i32
    return %arg0, %c0_i32 : i32, i32
  }
  func.func @transform_1(%arg0: i32) -> (i32, i32) {
    %c0_i32 = arith.constant 0 : i32
    %c0_i32_0 = arith.constant 0 : i32
    %c0_i32_1 = arith.constant 0 : i32
    return %c0_i32, %c0_i32_0 : i32, i32
  }
  func.func @transform_2(%arg0: i32) -> (i32, i32) {
    %c0_i32 = arith.constant 0 : i32
    %c0_i32_0 = arith.constant 0 : i32
    %c0_i32_1 = arith.constant 0 : i32
    return %c0_i32, %c0_i32_0 : i32, i32
  }
  func.func @transform_3(%arg0: i32) -> (i32, i32) {
    %c0_i32 = arith.constant 0 : i32
    %c0_i32_0 = arith.constant 0 : i32
    %c0_i32_1 = arith.constant 0 : i32
    return %c0_i32, %c0_i32_0 : i32, i32
  }
  func.func @transform_4(%arg0: i32) -> (i32, i32) {
    %c0_i32 = arith.constant 0 : i32
    %c0_i32_0 = arith.constant 0 : i32
    %c0_i32_1 = arith.constant 0 : i32
    return %c0_i32, %c0_i32_0 : i32, i32
  }
  func.func @transform_5(%arg0: i32) -> (i32, i32) {
    %c0_i32 = arith.constant 0 : i32
    %c0_i32_0 = arith.constant 0 : i32
    %c0_i32_1 = arith.constant 0 : i32
    return %c0_i32, %c0_i32_0 : i32, i32
  }
  func.func @transform_6(%arg0: i32) -> (i32, i32) {
    %c0_i32 = arith.constant 0 : i32
    %c0_i32_0 = arith.constant 0 : i32
    %c0_i32_1 = arith.constant 0 : i32
    return %c0_i32, %c0_i32_0 : i32, i32
  }
  func.func @transform_7(%arg0: i32) -> (i32, i32) {
    %c0_i32 = arith.constant 0 : i32
    %c0_i32_0 = arith.constant 0 : i32
    %c0_i32_1 = arith.constant 0 : i32
    return %c0_i32, %c0_i32_0 : i32, i32
  }
  func.func @transform_8(%arg0: i32) -> (i32, i32) {
    %c0_i32 = arith.constant 0 : i32
    %c0_i32_0 = arith.constant 0 : i32
    %c0_i32_1 = arith.constant 0 : i32
    return %c0_i32, %c0_i32_0 : i32, i32
  }
  func.func @transform_9(%arg0: i32) -> (i32, i32) {
    %c0_i32 = arith.constant 0 : i32
    %c0_i32_0 = arith.constant 0 : i32
    return %c0_i32, %arg0 : i32, i32
  }
}

</mosaic_0001>

<llo_original>
// kernel: tpu_custom_call.1
$region0: #{tpu_custom_call.1}
  #allocation0 [shape = 'u32[]', space=smem, size = 0x4, offset = 0x4, fixed_abs, tag = 'smem constant byte address 0x4 - core index']
  #allocation1 [shape = 'u32[144,128]{1,0:T(1,128)}', space=vmem, size = 0x12000, scoped, tag = 'internal scratch']
  %s0 = inlined_call_operand.vmem [shape: f32[256,16], index: 0, kind: input, shape index: {}]
  %s1 = inlined_call_operand.vmem [shape: bf16[32,16], index: 1, kind: input, shape index: {}]
  %s2 = inlined_call_operand.vmem [shape: f32[32,1], index: 2, kind: input, shape index: {}]
  %s3 = inlined_call_operand.vmem [shape: bf16[32,32], index: 3, kind: input, shape index: {}]
  %s4 = inlined_call_operand.vmem [shape: f32[32,1], index: 4, kind: input, shape index: {}]
  %s5 = inlined_call_operand.vmem [shape: bf16[32,32], index: 5, kind: input, shape index: {}]
  %s6 = inlined_call_operand.vmem [shape: f32[32,1], index: 6, kind: input, shape index: {}]
  %s7 = inlined_call_operand.vmem [shape: bf16[16,32], index: 7, kind: input, shape index: {}]
  %s8 = inlined_call_operand.vmem [shape: f32[16,1], index: 8, kind: input, shape index: {}]
  %s9 = inlined_call_operand.hbm [shape: f32[16,256], index: 9, kind: output, shape index: {}]
  %s10 = sld [smem:[#allocation0]]
  $region46: #{tpu_custom_call.1} parent=0
    _
  %s12 = ssub.s32 1, %s10
  %s13 = scalar_select 0, %s12, %s10
  $region1: #{tpu_custom_call.1} parent=0
    #allocation2 [shape = 'u8[16384]{0}', space=vmem, size = 0x4000, scoped, tag = 'output window, operand 0, single buffered']
    #allocation3 [shape = 's32[1]{0}', space=sflag, size = 0x4, scoped, tag = 'scoped memory for tpu_custom_call.1']
    %14 = vsyncpa [#allocation3], 0
    // Predicated region
    $region2: #{tpu_custom_call.1} parent=1 // pred_check
      _
    $region3: #{tpu_custom_call.1} parent=1 // pred_check_branch
      %16 = sbr.rel (0) target = $region5
    $region4: #{tpu_custom_call.1} parent=1 // pred_region
      _
    $region5: #{tpu_custom_call.1} parent=1 // pred_fallthru
      _
    // Predicated region
    $region6: #{tpu_custom_call.1} parent=1 // pred_check
      _
    $region7: #{tpu_custom_call.1} parent=1 // pred_check_branch
      %18 = sbr.rel (0) target = $region9
    $region8: #{tpu_custom_call.1} parent=1 // pred_region
      _
    $region9: #{tpu_custom_call.1} parent=1 // pred_fallthru
      _
    // Predicated region
    $region10: #{tpu_custom_call.1} parent=1 // pred_check
      _
    $region11: #{tpu_custom_call.1} parent=1 // pred_check_branch
      %20 = sbr.rel (0) target = $region13
    $region12: #{tpu_custom_call.1} parent=1 // pred_region
      _
    $region13: #{tpu_custom_call.1} parent=1 // pred_fallthru
      _
    // Predicated region
    $region14: #{tpu_custom_call.1} parent=1 // pred_check
      _
    $region15: #{tpu_custom_call.1} parent=1 // pred_check_branch
      %22 = sbr.rel (0) target = $region17
    $region16: #{tpu_custom_call.1} parent=1 // pred_region
      _
    $region17: #{tpu_custom_call.1} parent=1 // pred_fallthru
      _
    // Predicated region
    $region18: #{tpu_custom_call.1} parent=1 // pred_check
      _
    $region19: #{tpu_custom_call.1} parent=1 // pred_check_branch
      %24 = sbr.rel (0) target = $region21
    $region20: #{tpu_custom_call.1} parent=1 // pred_region
      _
    $region21: #{tpu_custom_call.1} parent=1 // pred_fallthru
      _
    // Predicated region
    $region22: #{tpu_custom_call.1} parent=1 // pred_check
      _
    $region23: #{tpu_custom_call.1} parent=1 // pred_check_branch
      %26 = sbr.rel (0) target = $region25
    $region24: #{tpu_custom_call.1} parent=1 // pred_region
      _
    $region25: #{tpu_custom_call.1} parent=1 // pred_fallthru
      _
    // Predicated region
    $region26: #{tpu_custom_call.1} parent=1 // pred_check
      _
    $region27: #{tpu_custom_call.1} parent=1 // pred_check_branch
      %28 = sbr.rel (0) target = $region29
    $region28: #{tpu_custom_call.1} parent=1 // pred_region
      _
    $region29: #{tpu_custom_call.1} parent=1 // pred_fallthru
      _
    // Predicated region
    $region30: #{tpu_custom_call.1} parent=1 // pred_check
      _
    $region31: #{tpu_custom_call.1} parent=1 // pred_check_branch
      %30 = sbr.rel (0) target = $region33
    $region32: #{tpu_custom_call.1} parent=1 // pred_region
      _
    $region33: #{tpu_custom_call.1} parent=1 // pred_fallthru
      _
    // Predicated region
    $region34: #{tpu_custom_call.1} parent=1 // pred_check
      _
    $region35: #{tpu_custom_call.1} parent=1 // pred_check_branch
      %32 = sbr.rel (0) target = $region37
    $region36: #{tpu_custom_call.1} parent=1 // pred_region
      _
    $region37: #{tpu_custom_call.1} parent=1 // pred_fallthru
      _
    %v34 = vld [vmem:[%s0] sm:$0xff]
    %v35 = vld [vmem:[%s0 + $0x8] sm:$0xff]
    %v36 = vld [vmem:[%s0 + $0x10] sm:$0xff]
    %v37 = vld [vmem:[%s0 + $0x18] sm:$0xff]
    %v38 = vld [vmem:[%s0 + $0x20] sm:$0xff]
    %v39 = vld [vmem:[%s0 + $0x28] sm:$0xff]
    %v40 = vld [vmem:[%s0 + $0x30] sm:$0xff]
    %v41 = vld [vmem:[%s0 + $0x38] sm:$0xff]
    %v42 = vld [vmem:[%s0 + $0x40] sm:$0xff]
    %v43 = vld [vmem:[%s0 + $0x48] sm:$0xff]
    %v44 = vld [vmem:[%s0 + $0x50] sm:$0xff]
    %v45 = vld [vmem:[%s0 + $0x58] sm:$0xff]
    %v46 = vld [vmem:[%s0 + $0x60] sm:$0xff]
    %v47 = vld [vmem:[%s0 + $0x68] sm:$0xff]
    %v48 = vld [vmem:[%s0 + $0x70] sm:$0xff]
    %v49 = vld [vmem:[%s0 + $0x78] sm:$0xff]
    %v50 = vld [vmem:[%s0 + $0x80] sm:$0xff]
    %v51 = vld [vmem:[%s0 + $0x88] sm:$0xff]
    %v52 = vld [vmem:[%s0 + $0x90] sm:$0xff]
    %v53 = vld [vmem:[%s0 + $0x98] sm:$0xff]
    %v54 = vld [vmem:[%s0 + $0xa0] sm:$0xff]
    %v55 = vld [vmem:[%s0 + $0xa8] sm:$0xff]
    %v56 = vld [vmem:[%s0 + $0xb0] sm:$0xff]
    %v57 = vld [vmem:[%s0 + $0xb8] sm:$0xff]
    %v58 = vld [vmem:[%s0 + $0xc0] sm:$0xff]
    %v59 = vld [vmem:[%s0 + $0xc8] sm:$0xff]
    %v60 = vld [vmem:[%s0 + $0xd0] sm:$0xff]
    %v61 = vld [vmem:[%s0 + $0xd8] sm:$0xff]
    %v62 = vld [vmem:[%s0 + $0xe0] sm:$0xff]
    %v63 = vld [vmem:[%s0 + $0xe8] sm:$0xff]
    %v64 = vld [vmem:[%s0 + $0xf0] sm:$0xff]
    %v65 = vld [vmem:[%s0 + $0xf8] sm:$0xff]
    %v66 = vpack.c.bf16 %v35, %v34
    %v67 = vpack.c.bf16 %v37, %v36
    %v68 = vpack.c.bf16 %v39, %v38
    %v69 = vpack.c.bf16 %v41, %v40
    %v70 = vpack.c.bf16 %v43, %v42
    %v71 = vpack.c.bf16 %v45, %v44
    %v72 = vpack.c.bf16 %v47, %v46
    %v73 = vpack.c.bf16 %v49, %v48
    %v74 = vpack.c.bf16 %v51, %v50
    %v75 = vpack.c.bf16 %v53, %v52
    %v76 = vpack.c.bf16 %v55, %v54
    %v77 = vpack.c.bf16 %v57, %v56
    %v78 = vpack.c.bf16 %v59, %v58
    %v79 = vpack.c.bf16 %v61, %v60
    %v80 = vpack.c.bf16 %v63, %v62
    %v81 = vpack.c.bf16 %v65, %v64
    %v82 = vld [vmem:[%s1] sm:$0xf]
    %v83 = vld [vmem:[%s1 + $0x4] sm:$0xf]
    %v84 = vld [vmem:[%s1 + $0x8] sm:$0xf]
    %v85 = vld [vmem:[%s1 + $0xc] sm:$0xf]
    %v86 = vld [vmem:[%s2] sm:$0xff]
    %v87 = vld [vmem:[%s2 + $0x8] sm:$0xff]
    %v88 = vld [vmem:[%s2 + $0x10] sm:$0xff]
    %v89 = vld [vmem:[%s2 + $0x18] sm:$0xff]
    %91 = vset.pattern.permute.xlu0 0
    %92 = vperm.xlu0 %91, %v86
    %v93 = vpop.permute.xlu0 %92
    %96 = vset.pattern.permute.xlu0 0
    %97 = vperm.xlu0 %96, %v87
    %v98 = vpop.permute.xlu0 %97
    %101 = vset.pattern.permute.xlu0 0
    %102 = vperm.xlu0 %101, %v88
    %v103 = vpop.permute.xlu0 %102
    %106 = vset.pattern.permute.xlu0 0
    %107 = vperm.xlu0 %106, %v89
    %v108 = vpop.permute.xlu0 %107
    %v114 = vunpack.c.l.b16 %v82
    %v115 = vunpack.c.l.b16 %v83
    %v116 = vunpack.c.l.b16 %v84
    %v117 = vunpack.c.l.b16 %v85
    %v118 = vpack.c.b16 %v115, %v114
    %v119 = vpack.c.b16 %v117, %v116
    %vm120 = vcmask 130048
    %v122 = vsel %vm120, %v118, 0
    %v125 = vsel %vm120, %v119, 0
    %v128 = vsel %vm120, %v66, 0
    %v131 = vsel %vm120, %v67, 0
    %v134 = vsel %vm120, %v68, 0
    %v137 = vsel %vm120, %v69, 0
    %v140 = vsel %vm120, %v70, 0
    %v143 = vsel %vm120, %v71, 0
    %v146 = vsel %vm120, %v72, 0
    %v149 = vsel %vm120, %v73, 0
    %v152 = vsel %vm120, %v74, 0
    %v155 = vsel %vm120, %v75, 0
    %v158 = vsel %vm120, %v76, 0
    %v161 = vsel %vm120, %v77, 0
    %v164 = vsel %vm120, %v78, 0
    %v167 = vsel %vm120, %v79, 0
    %v170 = vsel %vm120, %v80, 0
    %v173 = vsel %vm120, %v81, 0
    %175 = vmatprep.subr.bf16.mxu0 0
    %176 = vmatpush1.bf16.xpose.msra.mxu0 %v149
    %177 = vmatprep.subr.bf16.mxu0 0
    %178 = vmatpush1.bf16.xpose.msra.mxu0 %v146
    %179 = vmatprep.subr.bf16.mxu0 0
    %180 = vmatpush1.bf16.xpose.msra.mxu0 %v143
    %181 = vmatprep.subr.bf16.mxu0 0
    %182 = vmatpush1.bf16.xpose.msra.mxu0 %v140
    %183 = vmatprep.subr.bf16.mxu0 0
    %184 = vmatpush1.bf16.xpose.msra.mxu0 %v137
    %185 = vmatprep.subr.bf16.mxu0 0
    %186 = vmatpush1.bf16.xpose.msra.mxu0 %v134
    %187 = vmatprep.subr.bf16.mxu0 0
    %188 = vmatpush1.bf16.xpose.msra.mxu0 %v131
    %189 = vmatprep.subr.bf16.mxu0 0
    %190 = vmatpush1.bf16.xpose.msra.mxu0 %v128
    %191 = vmatprep.subr.bf16.mxu0 0
    %192 = vmatpush2.bf16.xpose.msra.mxu0 %v173
    %193 = vmatprep.subr.bf16.mxu0 0
    %194 = vmatpush2.bf16.xpose.msra.mxu0 %v170
    %195 = vmatprep.subr.bf16.mxu0 0
    %196 = vmatpush2.bf16.xpose.msra.mxu0 %v167
    %197 = vmatprep.subr.bf16.mxu0 0
    %198 = vmatpush2.bf16.xpose.msra.mxu0 %v164
    %199 = vmatprep.subr.bf16.mxu0 0
    %200 = vmatpush2.bf16.xpose.msra.mxu0 %v161
    %201 = vmatprep.subr.bf16.mxu0 0
    %202 = vmatpush2.bf16.xpose.msra.mxu0 %v158
    %203 = vmatprep.subr.bf16.mxu0 0
    %204 = vmatpush2.bf16.xpose.msra.mxu0 %v155
    %205 = vmatprep.subr.bf16.mxu0 0
    %206 = vmatpush2.bf16.xpose.msra.mxu0 %v152
    %207 = vmatprep.mubr.bf16.mxu0 0
    %208 = vmatmul.mubr.bf16.gmra.mxu0 %v122
    %v209 = vpop.f32.mrf.mxu0
    %v210 = vadd.f32 %v93, %v209
    %v211 = vpop.f32.mrf.mxu0
    %v212 = vadd.f32 %v93, %v211
    %v213 = vpop.f32.mrf.mxu0
    %v214 = vadd.f32 %v98, %v213
    %v215 = vpop.f32.mrf.mxu0
    %v216 = vadd.f32 %v98, %v215
    %217 = vmatprep.mubr.bf16.mxu0 0
    %218 = vmatmul.mubr.bf16.gmra.mxu0 %v125
    %v219 = vpop.f32.mrf.mxu0
    %v220 = vadd.f32 %v103, %v219
    %v221 = vpop.f32.mrf.mxu0
    %v222 = vadd.f32 %v103, %v221
    %v223 = vpop.f32.mrf.mxu0
    %v224 = vadd.f32 %v108, %v223
    %v225 = vpop.f32.mrf.mxu0
    %v226 = vadd.f32 %v108, %v225
    %227 = vdwg.mxu0
    %v228 = vtanh.pop %v210
    %v229 = vtanh.pop %v212
    %v230 = vtanh.pop %v214
    %v231 = vtanh.pop %v216
    %v232 = vtanh.pop %v220
    %v233 = vtanh.pop %v222
    %v234 = vtanh.pop %v224
    %v235 = vtanh.pop %v226
    %v236 = vpack.c.bf16 %v230, %v228
    %v237 = vpack.c.bf16 %v231, %v229
    %v238 = vpack.c.bf16 %v234, %v232
    %v239 = vpack.c.bf16 %v235, %v233
    %v240 = vld [vmem:[%s3] sm:$0xf]
    %v241 = vld [vmem:[%s3 + $0x4] sm:$0xf]
    %v242 = vld [vmem:[%s3 + $0x8] sm:$0xf]
    %v243 = vld [vmem:[%s3 + $0xc] sm:$0xf]
    %v244 = vld [vmem:[%s4] sm:$0xff]
    %v245 = vld [vmem:[%s4 + $0x8] sm:$0xff]
    %v246 = vld [vmem:[%s4 + $0x10] sm:$0xff]
    %v247 = vld [vmem:[%s4 + $0x18] sm:$0xff]
    %249 = vset.pattern.permute.xlu0 0
    %250 = vperm.xlu0 %249, %v244
    %v251 = vpop.permute.xlu0 %250
    %254 = vset.pattern.permute.xlu0 0
    %255 = vperm.xlu0 %254, %v245
    %v256 = vpop.permute.xlu0 %255
    %259 = vset.pattern.permute.xlu0 0
    %260 = vperm.xlu0 %259, %v246
    %v261 = vpop.permute.xlu0 %260
    %264 = vset.pattern.permute.xlu0 0
    %265 = vperm.xlu0 %264, %v247
    %v266 = vpop.permute.xlu0 %265
    %v272 = vunpack.c.l.b16 %v240
    %v273 = vunpack.c.l.b16 %v241
    %v274 = vunpack.c.l.b16 %v242
    %v275 = vunpack.c.l.b16 %v243
    %v276 = vpack.c.b16 %v273, %v272
    %v277 = vpack.c.b16 %v275, %v274
    %vm278 = vcmask 261120
    %v280 = vsel %vm278, %v276, 0
    %v283 = vsel %vm278, %v277, 0
    %285 = vmatprep.subr.bf16.mxu0 0
    %286 = vmatpush1.bf16.msra.mxu0 0
    %287 = vmatprep.subr.bf16.mxu0 0
    %288 = vmatpush1.bf16.msra.mxu0 0
    %289 = vmatprep.subr.bf16.mxu0 0
    %290 = vmatpush1.bf16.msra.mxu0 0
    %291 = vmatprep.subr.bf16.mxu0 0
    %292 = vmatpush1.bf16.msra.mxu0 0
    %293 = vmatprep.subr.bf16.mxu0 0
    %294 = vmatpush1.bf16.msra.mxu0 0
    %295 = vmatprep.subr.bf16.mxu0 0
    %296 = vmatpush1.bf16.msra.mxu0 0
    %297 = vmatprep.subr.bf16.mxu0 %v239
    %298 = vmatpush1.bf16.msra.mxu0 %v238
    %299 = vmatprep.subr.bf16.mxu0 %v237
    %300 = vmatpush1.bf16.msra.mxu0 %v236
    %301 = vmatprep.subr.bf16.mxu0 0
    %302 = vmatpush2.bf16.msra.mxu0 0
    %303 = vmatprep.subr.bf16.mxu0 0
    %304 = vmatpush2.bf16.msra.mxu0 0
    %305 = vmatprep.subr.bf16.mxu0 0
    %306 = vmatpush2.bf16.msra.mxu0 0
    %307 = vmatprep.subr.bf16.mxu0 0
    %308 = vmatpush2.bf16.msra.mxu0 0
    %309 = vmatprep.subr.bf16.mxu0 0
    %310 = vmatpush2.bf16.msra.mxu0 0
    %311 = vmatprep.subr.bf16.mxu0 0
    %312 = vmatpush2.bf16.msra.mxu0 0
    %313 = vmatprep.subr.bf16.mxu0 0
    %314 = vmatpush2.bf16.msra.mxu0 0
    %315 = vmatprep.subr.bf16.mxu0 0
    %316 = vmatpush2.bf16.msra.mxu0 0
    %317 = vmatprep.mubr.bf16.mxu0 0
    %318 = vmatmul.mubr.bf16.gmra.mxu0 %v280
    %v319 = vpop.f32.mrf.mxu0
    %v320 = vadd.f32 %v251, %v319
    %v321 = vpop.f32.mrf.mxu0
    %v322 = vadd.f32 %v251, %v321
    %v323 = vpop.f32.mrf.mxu0
    %v324 = vadd.f32 %v256, %v323
    %v325 = vpop.f32.mrf.mxu0
    %v326 = vadd.f32 %v256, %v325
    %327 = vmatprep.mubr.bf16.mxu0 0
    %328 = vmatmul.mubr.bf16.gmra.mxu0 %v283
    %v329 = vpop.f32.mrf.mxu0
    %v330 = vadd.f32 %v261, %v329
    %v331 = vpop.f32.mrf.mxu0
    %v332 = vadd.f32 %v261, %v331
    %v333 = vpop.f32.mrf.mxu0
    %v334 = vadd.f32 %v266, %v333
    %v335 = vpop.f32.mrf.mxu0
    %v336 = vadd.f32 %v266, %v335
    %337 = vdwg.mxu0
    %v338 = vtanh.pop %v320
    %v339 = vtanh.pop %v322
    %v340 = vtanh.pop %v324
    %v341 = vtanh.pop %v326
    %v342 = vtanh.pop %v330
    %v343 = vtanh.pop %v332
    %v344 = vtanh.pop %v334
    %v345 = vtanh.pop %v336
    %v346 = vpack.c.bf16 %v340, %v338
    %v347 = vpack.c.bf16 %v341, %v339
    %v348 = vpack.c.bf16 %v344, %v342
    %v349 = vpack.c.bf16 %v345, %v343
    %v350 = vld [vmem:[%s5] sm:$0xf]
    %v351 = vld [vmem:[%s5 + $0x4] sm:$0xf]
    %v352 = vld [vmem:[%s5 + $0x8] sm:$0xf]
    %v353 = vld [vmem:[%s5 + $0xc] sm:$0xf]
    %v354 = vld [vmem:[%s6] sm:$0xff]
    %v355 = vld [vmem:[%s6 + $0x8] sm:$0xff]
    %v356 = vld [vmem:[%s6 + $0x10] sm:$0xff]
    %v357 = vld [vmem:[%s6 + $0x18] sm:$0xff]
    %359 = vset.pattern.permute.xlu0 0
    %360 = vperm.xlu0 %359, %v354
    %v361 = vpop.permute.xlu0 %360
    %364 = vset.pattern.permute.xlu0 0
    %365 = vperm.xlu0 %364, %v355
    %v366 = vpop.permute.xlu0 %365
    %369 = vset.pattern.permute.xlu0 0
    %370 = vperm.xlu0 %369, %v356
    %v371 = vpop.permute.xlu0 %370
    %374 = vset.pattern.permute.xlu0 0
    %375 = vperm.xlu0 %374, %v357
    %v376 = vpop.permute.xlu0 %375
    %v382 = vunpack.c.l.b16 %v350
    %v383 = vunpack.c.l.b16 %v351
    %v384 = vunpack.c.l.b16 %v352
    %v385 = vunpack.c.l.b16 %v353
    %v386 = vpack.c.b16 %v383, %v382
    %v387 = vpack.c.b16 %v385, %v384
    %v389 = vsel %vm278, %v386, 0
    %v392 = vsel %vm278, %v387, 0
    %394 = vmatprep.subr.bf16.mxu0 0
    %395 = vmatpush1.bf16.msra.mxu0 0
    %396 = vmatprep.subr.bf16.mxu0 0
    %397 = vmatpush1.bf16.msra.mxu0 0
    %398 = vmatprep.subr.bf16.mxu0 0
    %399 = vmatpush1.bf16.msra.mxu0 0
    %400 = vmatprep.subr.bf16.mxu0 0
    %401 = vmatpush1.bf16.msra.mxu0 0
    %402 = vmatprep.subr.bf16.mxu0 0
    %403 = vmatpush1.bf16.msra.mxu0 0
    %404 = vmatprep.subr.bf16.mxu0 0
    %405 = vmatpush1.bf16.msra.mxu0 0
    %406 = vmatprep.subr.bf16.mxu0 %v349
    %407 = vmatpush1.bf16.msra.mxu0 %v348
    %408 = vmatprep.subr.bf16.mxu0 %v347
    %409 = vmatpush1.bf16.msra.mxu0 %v346
    %410 = vmatprep.subr.bf16.mxu0 0
    %411 = vmatpush2.bf16.msra.mxu0 0
    %412 = vmatprep.subr.bf16.mxu0 0
    %413 = vmatpush2.bf16.msra.mxu0 0
    %414 = vmatprep.subr.bf16.mxu0 0
    %415 = vmatpush2.bf16.msra.mxu0 0
    %416 = vmatprep.subr.bf16.mxu0 0
    %417 = vmatpush2.bf16.msra.mxu0 0
    %418 = vmatprep.subr.bf16.mxu0 0
    %419 = vmatpush2.bf16.msra.mxu0 0
    %420 = vmatprep.subr.bf16.mxu0 0
    %421 = vmatpush2.bf16.msra.mxu0 0
    %422 = vmatprep.subr.bf16.mxu0 0
    %423 = vmatpush2.bf16.msra.mxu0 0
    %424 = vmatprep.subr.bf16.mxu0 0
    %425 = vmatpush2.bf16.msra.mxu0 0
    %426 = vmatprep.mubr.bf16.mxu0 0
    %427 = vmatmul.mubr.bf16.gmra.mxu0 %v389
    %v428 = vpop.f32.mrf.mxu0
    %v429 = vadd.f32 %v361, %v428
    %v430 = vpop.f32.mrf.mxu0
    %v431 = vadd.f32 %v361, %v430
    %v432 = vpop.f32.mrf.mxu0
    %v433 = vadd.f32 %v366, %v432
    %v434 = vpop.f32.mrf.mxu0
    %v435 = vadd.f32 %v366, %v434
    %436 = vmatprep.mubr.bf16.mxu0 0
    %437 = vmatmul.mubr.bf16.gmra.mxu0 %v392
    %v438 = vpop.f32.mrf.mxu0
    %v439 = vadd.f32 %v371, %v438
    %v440 = vpop.f32.mrf.mxu0
    %v441 = vadd.f32 %v371, %v440
    %v442 = vpop.f32.mrf.mxu0
    %v443 = vadd.f32 %v376, %v442
    %v444 = vpop.f32.mrf.mxu0
    %v445 = vadd.f32 %v376, %v444
    %446 = vdwg.mxu0
    %v447 = vtanh.pop %v429
    %v448 = vtanh.pop %v431
    %v449 = vtanh.pop %v433
    %v450 = vtanh.pop %v435
    %v451 = vtanh.pop %v439
    %v452 = vtanh.pop %v441
    %v453 = vtanh.pop %v443
    %v454 = vtanh.pop %v445
    %v455 = vpack.c.bf16 %v449, %v447
    %v456 = vpack.c.bf16 %v450, %v448
    %v457 = vpack.c.bf16 %v453, %v451
    %v458 = vpack.c.bf16 %v454, %v452
    %v459 = vld [vmem:[%s7] sm:$0xf]
    %v460 = vld [vmem:[%s7 + $0x4] sm:$0xf]
    %v461 = vld [vmem:[%s8] sm:$0xff]
    %v462 = vld [vmem:[%s8 + $0x8] sm:$0xff]
    %464 = vset.pattern.permute.xlu0 0
    %465 = vperm.xlu0 %464, %v461
    %v466 = vpop.permute.xlu0 %465
    %469 = vset.pattern.permute.xlu0 0
    %470 = vperm.xlu0 %469, %v462
    %v471 = vpop.permute.xlu0 %470
    %v475 = vunpack.c.l.b16 %v459
    %v476 = vunpack.c.l.b16 %v460
    %v477 = vpack.c.b16 %v476, %v475
    %v479 = vsel %vm278, %v477, 0
    %481 = vmatprep.subr.bf16.mxu0 0
    %482 = vmatpush1.bf16.msra.mxu0 0
    %483 = vmatprep.subr.bf16.mxu0 0
    %484 = vmatpush1.bf16.msra.mxu0 0
    %485 = vmatprep.subr.bf16.mxu0 0
    %486 = vmatpush1.bf16.msra.mxu0 0
    %487 = vmatprep.subr.bf16.mxu0 0
    %488 = vmatpush1.bf16.msra.mxu0 0
    %489 = vmatprep.subr.bf16.mxu0 0
    %490 = vmatpush1.bf16.msra.mxu0 0
    %491 = vmatprep.subr.bf16.mxu0 0
    %492 = vmatpush1.bf16.msra.mxu0 0
    %493 = vmatprep.subr.bf16.mxu0 %v458
    %494 = vmatpush1.bf16.msra.mxu0 %v457
    %495 = vmatprep.subr.bf16.mxu0 %v456
    %496 = vmatpush1.bf16.msra.mxu0 %v455
    %497 = vmatprep.subr.bf16.mxu0 0
    %498 = vmatpush2.bf16.msra.mxu0 0
    %499 = vmatprep.subr.bf16.mxu0 0
    %500 = vmatpush2.bf16.msra.mxu0 0
    %501 = vmatprep.subr.bf16.mxu0 0
    %502 = vmatpush2.bf16.msra.mxu0 0
    %503 = vmatprep.subr.bf16.mxu0 0
    %504 = vmatpush2.bf16.msra.mxu0 0
    %505 = vmatprep.subr.bf16.mxu0 0
    %506 = vmatpush2.bf16.msra.mxu0 0
    %507 = vmatprep.subr.bf16.mxu0 0
    %508 = vmatpush2.bf16.msra.mxu0 0
    %509 = vmatprep.subr.bf16.mxu0 0
    %510 = vmatpush2.bf16.msra.mxu0 0
    %511 = vmatprep.subr.bf16.mxu0 0
    %512 = vmatpush2.bf16.msra.mxu0 0
    %513 = vmatprep.mubr.bf16.mxu0 0
    %514 = vmatmul.mubr.bf16.gmra.mxu0 %v479
    %v515 = vpop.f32.mrf.mxu0
    %v516 = vadd.f32 %v466, %v515
    %v517 = vpop.f32.mrf.mxu0
    %v518 = vadd.f32 %v466, %v517
    %v519 = vpop.f32.mrf.mxu0
    %v520 = vadd.f32 %v471, %v519
    %v521 = vpop.f32.mrf.mxu0
    %v522 = vadd.f32 %v471, %v521
    %523 = vdwg.mxu0
    %524 = vst [vmem:[#allocation2] sm:$0xff] %v516
    %525 = vst [vmem:[#allocation2 + $0x8] sm:$0xff] %v518
    %526 = vst [vmem:[#allocation2 + $0x10] sm:$0xff] %v520
    %527 = vst [vmem:[#allocation2 + $0x18] sm:$0xff] %v522
    // Predicated region
    $region38: #{tpu_custom_call.1} parent=1 // pred_check
      _
    $region39: #{tpu_custom_call.1} parent=1 // pred_check_branch
      %529 = sbr.rel (0) target = $region41
    $region40: #{tpu_custom_call.1} parent=1 // pred_region
      %s531 = ssub.s32 512, 512
      %532 = vsyncadd [#allocation3], %s531
      %s533 = sshll.u32 [#allocation2], 4
      %s534 = int_to_ptr.vmem [resolvable:$true] %s533
      %539 = dma.vmem_to_hbm [thread:$0]  %s534, 512, %s9, [#allocation3], 256, 256, 16
    $region41: #{tpu_custom_call.1} parent=1 // pred_fallthru
      _
    // Predicated region
    $region42: #{tpu_custom_call.1} parent=1 // pred_check
      _
    $region43: #{tpu_custom_call.1} parent=1 // pred_check_branch
      %541 = sbr.rel (0) target = $region45
    $region44: #{tpu_custom_call.1} parent=1 // pred_region
      %542 = dma.done [#allocation3], 512
    $region45: #{tpu_custom_call.1} parent=1 // pred_fallthru
      _
    %543 = vsyncpa [#allocation3], 1

</llo_original>
